<compile_context>
chip_gen: v5e
topology: v5e:2x2
jax: 0.10.0
libtpu: 0.0.40
codegen_flags: <defaults>
</compile_context>

<pallas_src>
import functools

import jax
import jax.numpy as jnp
from jax.experimental import pallas as pl
from jax.experimental.pallas import tpu as pltpu


def _round_up(x, m):
    return ((x + m - 1) // m) * m


# ---------------------------------------------------------------------------
# Kernel
# ---------------------------------------------------------------------------
def _nam_kernel(n_hidden, x_ref, w0_ref, b0_ref, *refs):
    """Fused NAM forward for one batch tile.

    refs = ([w_i, b_i] per extra hidden layer ..., wl_row, total_bias(SMEM), out)
    Weights are packed block-diagonally so every layer is one lane-dense MXU
    matmul over the (TILE_B, F*H) activation slab.
    """
    out_ref = refs[-1]                 # (TILE_B, 2)
    bias_ref = refs[-2]                # (1,) SMEM: global bias + sum(last-layer biases)
    wl_ref = refs[-3]                  # (1, F*Hlast) f32 row vector
    hidden_refs = refs[:-3]            # 2 * n_hidden refs

    x = x_ref[...]                                        # (TILE_B, F) f32
    w0 = w0_ref[...]                                      # (F, F*H0) block-structured

    # Layer 0: per-feature Linear(1, H0) as a single MXU matmul, + bias, ReLU.
    h = jnp.dot(x.astype(w0.dtype), w0, preferred_element_type=jnp.float32)
    h = jnp.maximum(h + b0_ref[...], 0.0)
    # TODO(synk): torch.nn.Dropout(p=0.5) is eval-mode identity here; training-mode
    # stochastic dropout is not reproduced.

    # Hidden layers: one block-diagonal (F*Hin, F*Hout) MXU matmul each.
    for li in range(n_hidden):
        w = hidden_refs[2 * li][...]                      # (F*Hin, F*Hout)
        b = hidden_refs[2 * li + 1][...]                  # (1, F*Hout) f32
        h = jnp.dot(h.astype(w.dtype), w, preferred_element_type=jnp.float32)
        h = jnp.maximum(h + b, 0.0)

    # Fused final per-feature Linear(Hlast,1) + sum over features + all biases:
    # exact-f32 VPU multiply + one XLU lane reduction + SMEM scalar.
    s = jnp.sum(h * wl_ref[...], axis=-1, keepdims=True) + bias_ref[0]
    p = jax.nn.sigmoid(s)                                 # (TILE_B, 1)

    # Fused [1 - p, p] pairing (two static-slice stores; no XLA concat pass).
    out_ref[:, 0:1] = 1.0 - p
    out_ref[:, 1:2] = p


# ---------------------------------------------------------------------------
# Wrapper-side parameter packing (done once, outside the kernel)
# ---------------------------------------------------------------------------
def pack_nam_params(flat_params, mxu_dtype=jnp.float32):
    """Pack per-feature stacked params into lane-dense block-diagonal matrices.

    flat_params = (w0 (F,H0), b0 (F,H0), [w (F,Hin,Hout), b (F,Hout)]...,
                   wl (F,Hlast), bl (1,F), bias (1,1))
    returns packed = (W0_pack (F, F*H0), b0 (1, F*H0),
                      [W_blockdiag (F*Hin, F*Hout), b (1, F*Hout)]...,
                      wl_row (1, F*Hlast), total_bias (1,)), n_hidden
    """
    n_hidden = (len(flat_params) - 5) // 2
    w0, b0 = flat_params[0], flat_params[1]
    n_feat, h0 = w0.shape
    eye = jnp.eye(n_feat, dtype=jnp.float32)

    packed = [
        (eye[:, :, None] * w0[:, None, :]).reshape(n_feat, n_feat * h0).astype(mxu_dtype),
        b0.reshape(1, n_feat * h0).astype(jnp.float32),
    ]
    idx = 2
    for _ in range(n_hidden):
        w, b = flat_params[idx], flat_params[idx + 1]
        _, hin, hout = w.shape
        wbd = (eye[:, None, :, None] * w[:, :, None, :]).reshape(n_feat * hin, n_feat * hout)
        packed.append(wbd.astype(mxu_dtype))
        packed.append(b.reshape(1, n_feat * hout).astype(jnp.float32))
        idx += 2

    wl, bl, bias = flat_params[idx], flat_params[idx + 1], flat_params[idx + 2]
    hlast = wl.shape[1]
    packed.append(wl.reshape(1, n_feat * hlast).astype(jnp.float32))
    # Exact fold: contributions are summed over features, so bl folds into the bias.
    packed.append((bias.reshape(()) + jnp.sum(bl)).reshape(1).astype(jnp.float32))
    return tuple(packed), n_hidden


def _pick_tile_b(batch, packed_params):
    """Batch tile sized against a conservative activation budget (v7x's 64 MiB
    physical / 32 MiB default scoped VMEM is the tight case), multiple of 8."""
    max_width = max(max(p.shape[-1] for p in packed_params[:-1]), 128)
    budget = 8 << 20                        # activations + double-buffered x / out
    tile = budget // (4 * 4 * max_width)    # a few f32 copies of the widest slab/row
    tile = max(8, min(1024, (tile // 8) * 8))
    return min(tile, _round_up(batch, 8))


# ---------------------------------------------------------------------------
# Forward wrapper
# ---------------------------------------------------------------------------
def nam_forward(x, packed_params, n_hidden, *, tile_b=None):
    """x: (B, F) float32.  packed_params from pack_nam_params.  Returns (B, 2)."""
    batch, n_feat = x.shape
    if tile_b is None:
        tile_b = _pick_tile_b(batch, packed_params)
    b_pad = _round_up(batch, tile_b)
    if b_pad != batch:                       # ragged tail: pad, slice after
        x = jnp.pad(x, ((0, b_pad - batch), (0, 0)))

    in_specs = [pl.BlockSpec((tile_b, n_feat), lambda i: (i, 0))]
    # Parameters: full-array blocks, constant index_map -> fetched once, resident.
    for p in packed_params[:-1]:
        in_specs.append(pl.BlockSpec(p.shape, lambda i: (0, 0)))
    # Fused scalar bias lives in SMEM (no (8,128) VMEM tile for one scalar).
    in_specs.append(pl.BlockSpec(memory_space=pltpu.MemorySpace.SMEM))

    kernel = functools.partial(_nam_kernel, n_hidden)
    out = pl.pallas_call(
        kernel,
        grid=(b_pad // tile_b,),
        in_specs=in_specs,
        out_specs=pl.BlockSpec((tile_b, 2), lambda i: (i, 0)),
        out_shape=jax.ShapeDtypeStruct((b_pad, 2), jnp.float32),
        compiler_params=pltpu.CompilerParams(
            dimension_semantics=("parallel",)),
    )(x, *packed_params)

    return out[:batch]


# ---------------------------------------------------------------------------
# PyTorch-style init (per-feature stacked) + pure-JAX reference
# ---------------------------------------------------------------------------
def _init_params(key, input_size, n_layers):
    """Uniform +-1/sqrt(fan_in) init, stacked over features (PyTorch Linear style)."""
    n_feat = input_size
    ks = iter(jax.random.split(key, 2 * (len(n_layers) + 1)))
    flat = []

    h0 = n_layers[0]
    lim = 1.0  # fan_in = 1
    flat.append(jax.random.uniform(next(ks), (n_feat, h0), jnp.float32, -lim, lim))
    flat.append(jax.random.uniform(next(ks), (n_feat, h0), jnp.float32, -lim, lim))
    prev = h0
    for h in n_layers[1:]:
        lim = 1.0 / (prev ** 0.5)
        flat.append(jax.random.uniform(next(ks), (n_feat, prev, h), jnp.float32, -lim, lim))
        flat.append(jax.random.uniform(next(ks), (n_feat, h), jnp.float32, -lim, lim))
        prev = h
    lim = 1.0 / (prev ** 0.5)
    flat.append(jax.random.uniform(next(ks), (n_feat, prev), jnp.float32, -lim, lim))
    flat.append(jax.random.uniform(next(ks), (1, n_feat), jnp.float32, -lim, lim))
    flat.append(jnp.zeros((1, 1), jnp.float32))   # global NAM bias
    return tuple(flat)


def _ref_nam(x, flat_params, n_layers):
    """Pure-JAX reference mirroring PyTorch eval-mode semantics."""
    w0, b0 = flat_params[0], flat_params[1]
    h = jnp.maximum(x[:, :, None] * w0[None] + b0[None], 0.0)
    idx = 2
    for _ in range(len(n_layers) - 1):
        w, b = flat_params[idx], flat_params[idx + 1]
        h = jnp.maximum(jnp.einsum('bfh,fhk->bfk', h, w) + b[None], 0.0)
        idx += 2
    wl, bl, bias = flat_params[idx], flat_params[idx + 1], flat_params[idx + 2]
    contrib = jnp.sum(h * wl[None], axis=-1) + bl                    # (B, F)
    p = jax.nn.sigmoid(jnp.sum(contrib, axis=-1, keepdims=True) + bias[0, 0])
    return jnp.concatenate([1.0 - p, p], axis=1)                     # (B, 2)


if __name__ == "__main__":
    batch = 8
    input_size = 4            # number of features F
    n_layers = (32, 32)       # hidden widths of each FeatureNN

    root = jax.random.PRNGKey(0)
    k_params, k_x = jax.random.split(root)
    flat_params = _init_params(k_params, input_size, n_layers)
    x = jax.random.normal(k_x, (batch, input_size), dtype=jnp.float32)

    ref = jax.block_until_ready(_ref_nam(x, flat_params, n_layers))

    # f32 path.  Tolerance covers possible MXU default-precision (bf16-input)
    # handling of f32 contractions differing between Mosaic and the XLA reference.
    packed_f32, n_hidden = pack_nam_params(flat_params, mxu_dtype=jnp.float32)
    out = jax.block_until_ready(nam_forward(x, packed_f32, n_hidden))
    assert out.shape == (batch, 2), out.shape
    assert jnp.allclose(out, ref, atol=3e-2), (out, ref)
    assert jnp.allclose(out.sum(axis=1), 1.0, atol=1e-5)   # [1-p, p] rows sum to 1

    # Multi-tile grid + ragged batch tail (padding / slicing path).
    batch2 = 37
    x2 = jax.random.normal(jax.random.PRNGKey(1), (batch2, input_size), jnp.float32)
    out2 = jax.block_until_ready(nam_forward(x2, packed_f32, n_hidden, tile_b=16))
    ref2 = _ref_nam(x2, flat_params, n_layers)
    assert out2.shape == (batch2, 2), out2.shape
    assert jnp.allclose(out2, ref2, atol=3e-2), (out2, ref2)

    # bf16 MXU-operand path (v6e / v7x throughput option), f32 accumulation.
    packed_bf16, _ = pack_nam_params(flat_params, mxu_dtype=jnp.bfloat16)
    out_bf16 = jax.block_until_ready(nam_forward(x, packed_bf16, n_hidden))
    assert out_bf16.shape == (batch, 2)
    assert jnp.allclose(out_bf16, ref, atol=1e-1), (out_bf16, ref)

    print("KERNEL_OK")
</pallas_src>

<mosaic_0001>
module attributes {stable_mosaic.version = 11 : i64} {
  func.func @_nam_kernel(%arg0: i32, %arg1: memref<8x4xf32, #tpu.memory_space<vmem>>, %arg2: memref<4x128xf32, #tpu.memory_space<vmem>>, %arg3: memref<1x128xf32, #tpu.memory_space<vmem>>, %arg4: memref<128x128xf32, #tpu.memory_space<vmem>>, %arg5: memref<1x128xf32, #tpu.memory_space<vmem>>, %arg6: memref<1x128xf32, #tpu.memory_space<vmem>>, %arg7: memref<1xf32, #tpu.memory_space<smem>>, %arg8: memref<8x2xf32, #tpu.memory_space<vmem>>) attributes {dimension_semantics = [#tpu.dimension_semantics<parallel>], iteration_bounds = array<i64: 1>, scalar_prefetch = 0 : i64, scratch_operands = 0 : i64, tpu.core_type = #tpu.core_type<tc>, window_params = [{transform_indices = @transform_0, window_bounds = array<i64: 8, 4>}, {pipeline_mode = #tpu.pipeline_mode<synchronous>, transform_indices = @transform_1, window_bounds = array<i64: 4, 128>}, {pipeline_mode = #tpu.pipeline_mode<synchronous>, transform_indices = @transform_2, window_bounds = array<i64: 1, 128>}, {pipeline_mode = #tpu.pipeline_mode<synchronous>, transform_indices = @transform_3, window_bounds = array<i64: 128, 128>}, {pipeline_mode = #tpu.pipeline_mode<synchronous>, transform_indices = @transform_4, window_bounds = array<i64: 1, 128>}, {pipeline_mode = #tpu.pipeline_mode<synchronous>, transform_indices = @transform_5, window_bounds = array<i64: 1, 128>}, {transform_indices = @transform_6, window_bounds = array<i64: 1>}, {transform_indices = @transform_7, window_bounds = array<i64: 8, 2>}]} {
    %c0 = arith.constant 0 : index
    %c0_0 = arith.constant 0 : index
    %0 = vector.load %arg1[%c0, %c0_0] : memref<8x4xf32, #tpu.memory_space<vmem>>, vector<8x4xf32>
    %c0_1 = arith.constant 0 : index
    %c0_2 = arith.constant 0 : index
    %1 = vector.load %arg2[%c0_1, %c0_2] : memref<4x128xf32, #tpu.memory_space<vmem>>, vector<4x128xf32>
    %cst = arith.constant dense<0.000000e+00> : vector<8x128xf32>
    %2 = tpu.matmul %0, %1, %cst {dimension_numbers = #tpu.dot_dimension_numbers<[1], [0], [0], [1], [0, 0, 1, 1], [], []>} : vector<8x4xf32>, vector<4x128xf32>, vector<8x128xf32> -> vector<8x128xf32>
    %c0_3 = arith.constant 0 : index
    %c0_4 = arith.constant 0 : index
    %3 = vector.load %arg3[%c0_3, %c0_4] : memref<1x128xf32, #tpu.memory_space<vmem>>, vector<1x128xf32>
    %4 = vector.broadcast %3 : vector<1x128xf32> to vector<8x128xf32>
    %5 = arith.addf %2, %4 : vector<8x128xf32>
    %cst_5 = arith.constant 0.000000e+00 : f32
    %6 = vector.broadcast %cst_5 : f32 to vector<8x128xf32>
    %7 = arith.maximumf %5, %6 : vector<8x128xf32>
    %c0_6 = arith.constant 0 : index
    %c0_7 = arith.constant 0 : index
    %8 = vector.load %arg4[%c0_6, %c0_7] : memref<128x128xf32, #tpu.memory_space<vmem>>, vector<128x128xf32>
    %c0_8 = arith.constant 0 : index
    %c0_9 = arith.constant 0 : index
    %9 = vector.load %arg5[%c0_8, %c0_9] : memref<1x128xf32, #tpu.memory_space<vmem>>, vector<1x128xf32>
    %cst_10 = arith.constant dense<0.000000e+00> : vector<8x128xf32>
    %10 = tpu.matmul %7, %8, %cst_10 {dimension_numbers = #tpu.dot_dimension_numbers<[1], [0], [0], [1], [0, 0, 1, 1], [], []>} : vector<8x128xf32>, vector<128x128xf32>, vector<8x128xf32> -> vector<8x128xf32>
    %11 = vector.broadcast %9 : vector<1x128xf32> to vector<8x128xf32>
    %12 = arith.addf %10, %11 : vector<8x128xf32>
    %cst_11 = arith.constant 0.000000e+00 : f32
    %13 = vector.broadcast %cst_11 : f32 to vector<8x128xf32>
    %14 = arith.maximumf %12, %13 : vector<8x128xf32>
    %c0_12 = arith.constant 0 : index
    %c0_13 = arith.constant 0 : index
    %15 = vector.load %arg6[%c0_12, %c0_13] : memref<1x128xf32, #tpu.memory_space<vmem>>, vector<1x128xf32>
    %16 = vector.broadcast %15 : vector<1x128xf32> to vector<8x128xf32>
    %17 = arith.mulf %14, %16 : vector<8x128xf32>
    %cst_14 = arith.constant dense<0.000000e+00> : vector<8xf32>
    %18 = vector.multi_reduction <add>, %17, %cst_14 [1] : vector<8x128xf32> to vector<8xf32>
    %19 = vector.shape_cast %18 : vector<8xf32> to vector<8x1xf32>
    %c0_15 = arith.constant 0 : index
    %20 = memref.load %arg7[%c0_15] : memref<1xf32, #tpu.memory_space<smem>>
    %21 = vector.broadcast %20 : f32 to vector<8x1xf32>
    %22 = arith.addf %19, %21 : vector<8x1xf32>
    %23 = arith.negf %22 : vector<8x1xf32>
    %24 = math.exp %23 : vector<8x1xf32>
    %cst_16 = arith.constant 1.000000e+00 : f32
    %25 = vector.broadcast %cst_16 : f32 to vector<8x1xf32>
    %26 = arith.addf %25, %24 : vector<8x1xf32>
    %27 = arith.divf %25, %26 : vector<8x1xf32>
    %cst_17 = arith.constant 1.000000e+00 : f32
    %28 = vector.broadcast %cst_17 : f32 to vector<8x1xf32>
    %29 = arith.subf %28, %27 : vector<8x1xf32>
    %c0_18 = arith.constant 0 : index
    %c0_19 = arith.constant 0 : index
    %30 = vector.load %arg8[%c0_18, %c0_19] : memref<8x2xf32, #tpu.memory_space<vmem>>, vector<8x1xf32>
    tpu.vector_store %arg8[%c0_18, %c0_19], %29 {strides = array<i32>} : memref<8x2xf32, #tpu.memory_space<vmem>>, vector<8x1xf32>,
    %c0_20 = arith.constant 0 : index
    %c1 = arith.constant 1 : index
    %31 = vector.load %arg8[%c0_20, %c1] : memref<8x2xf32, #tpu.memory_space<vmem>>, vector<8x1xf32>
    tpu.vector_store %arg8[%c0_20, %c1], %27 {strides = array<i32>} : memref<8x2xf32, #tpu.memory_space<vmem>>, vector<8x1xf32>,
    return
  }
  func.func @transform_0(%arg0: i32) -> (i32, i32) {
    %c0_i32 = arith.constant 0 : i32
    %c0_i32_0 = arith.constant 0 : i32
    return %arg0, %c0_i32 : i32, i32
  }
  func.func @transform_1(%arg0: i32) -> (i32, i32) {
    %c0_i32 = arith.constant 0 : i32
    %c0_i32_0 = arith.constant 0 : i32
    %c0_i32_1 = arith.constant 0 : i32
    return %c0_i32, %c0_i32_0 : i32, i32
  }
  func.func @transform_2(%arg0: i32) -> (i32, i32) {
    %c0_i32 = arith.constant 0 : i32
    %c0_i32_0 = arith.constant 0 : i32
    %c0_i32_1 = arith.constant 0 : i32
    return %c0_i32, %c0_i32_0 : i32, i32
  }
  func.func @transform_3(%arg0: i32) -> (i32, i32) {
    %c0_i32 = arith.constant 0 : i32
    %c0_i32_0 = arith.constant 0 : i32
    %c0_i32_1 = arith.constant 0 : i32
    return %c0_i32, %c0_i32_0 : i32, i32
  }
  func.func @transform_4(%arg0: i32) -> (i32, i32) {
    %c0_i32 = arith.constant 0 : i32
    %c0_i32_0 = arith.constant 0 : i32
    %c0_i32_1 = arith.constant 0 : i32
    return %c0_i32, %c0_i32_0 : i32, i32
  }
  func.func @transform_5(%arg0: i32) -> (i32, i32) {
    %c0_i32 = arith.constant 0 : i32
    %c0_i32_0 = arith.constant 0 : i32
    %c0_i32_1 = arith.constant 0 : i32
    return %c0_i32, %c0_i32_0 : i32, i32
  }
  func.func @transform_6(%arg0: i32) -> i32 {
    %c0_i32 = arith.constant 0 : i32
    %c0_i32_0 = arith.constant 0 : i32
    return %c0_i32 : i32
  }
  func.func @transform_7(%arg0: i32) -> (i32, i32) {
    %c0_i32 = arith.constant 0 : i32
    %c0_i32_0 = arith.constant 0 : i32
    return %arg0, %c0_i32 : i32, i32
  }
}

</mosaic_0001>

<llo_original>
// kernel: tpu_custom_call.1
$region0: #{tpu_custom_call.1}
  #allocation0 [shape = 'u32[]', space=smem, size = 0x4, offset = 0x4, fixed_abs, tag = 'smem constant byte address 0x4 - core index']
  #allocation1 [shape = 'u32[72,128]{1,0:T(1,128)}', space=vmem, size = 0x9000, scoped, tag = 'internal scratch']
  #allocation2 [shape = 'f32[1]{0:T(128)S(6)}', space=smem, size = 0x200, scoped, tag = 'scoped memory for tpu_custom_call.1']
  %s0 = inlined_call_operand.vmem [shape: f32[8,4], index: 0, kind: input, shape index: {}]
  %s1 = inlined_call_operand.vmem [shape: f32[4,128], index: 1, kind: input, shape index: {}]
  %s2 = inlined_call_operand.vmem [shape: f32[1,128], index: 2, kind: input, shape index: {}]
  %s3 = inlined_call_operand.hbm [shape: f32[128,128], index: 3, kind: input, shape index: {}]
  %s4 = inlined_call_operand.vmem [shape: f32[1,128], index: 4, kind: input, shape index: {}]
  %s5 = inlined_call_operand.vmem [shape: f32[1,128], index: 5, kind: input, shape index: {}]
  %s6 = inlined_call_operand.<no memory space> [shape: f32[1], index: 6, kind: input, shape index: {}]
  %s7 = inlined_call_operand.vmem [shape: f32[8,2], index: 7, kind: output, shape index: {}]
  %s8 = sld [smem:[#allocation0]]
  $region42: #{tpu_custom_call.1} parent=0
    _
  %s10 = ssub.s32 1, %s8
  %s11 = scalar_select 0, %s10, %s8
  %12 = sst [smem:[#allocation2]] %s6
  $region1: #{tpu_custom_call.1} parent=0
    #allocation3 [shape = 'u8[65536]{0}', space=vmem, size = 0x10000, scoped, tag = 'input window, operand 3, single buffered']
    #allocation4 [shape = 's32[1]{0}', space=sflag, size = 0x4, scoped, tag = 'scoped memory for tpu_custom_call.1']
    %13 = vsyncpa [#allocation4], 0
    // Predicated region
    $region2: #{tpu_custom_call.1} parent=1 // pred_check
      _
    $region3: #{tpu_custom_call.1} parent=1 // pred_check_branch
      %15 = sbr.rel (0) target = $region5
    $region4: #{tpu_custom_call.1} parent=1 // pred_region
      _
    $region5: #{tpu_custom_call.1} parent=1 // pred_fallthru
      _
    // Predicated region
    $region6: #{tpu_custom_call.1} parent=1 // pred_check
      _
    $region7: #{tpu_custom_call.1} parent=1 // pred_check_branch
      %17 = sbr.rel (0) target = $region9
    $region8: #{tpu_custom_call.1} parent=1 // pred_region
      _
    $region9: #{tpu_custom_call.1} parent=1 // pred_fallthru
      _
    // Predicated region
    $region10: #{tpu_custom_call.1} parent=1 // pred_check
      _
    $region11: #{tpu_custom_call.1} parent=1 // pred_check_branch
      %19 = sbr.rel (0) target = $region13
    $region12: #{tpu_custom_call.1} parent=1 // pred_region
      _
    $region13: #{tpu_custom_call.1} parent=1 // pred_fallthru
      _
    // Predicated region
    $region14: #{tpu_custom_call.1} parent=1 // pred_check
      _
    $region15: #{tpu_custom_call.1} parent=1 // pred_check_branch
      %21 = sbr.rel (0) target = $region17
    $region16: #{tpu_custom_call.1} parent=1 // pred_region
      %23 = vsyncadd [#allocation4], 0
      %s24 = sshll.u32 %s3, 4
      %s25 = int_to_ptr.hbm [resolvable:$true] %s24
      %s26 = sshll.u32 [#allocation3], 4
      %s27 = int_to_ptr.vmem [resolvable:$true] %s26
      %32 = dma.hbm_to_vmem [thread:$0]  %s25, 2048, %s27, [#allocation4], 128, 128, 8
    $region17: #{tpu_custom_call.1} parent=1 // pred_fallthru
      _
    // Predicated region
    $region18: #{tpu_custom_call.1} parent=1 // pred_check
      _
    $region19: #{tpu_custom_call.1} parent=1 // pred_check_branch
      %34 = sbr.rel (0) target = $region21
    $region20: #{tpu_custom_call.1} parent=1 // pred_region
      _
    $region21: #{tpu_custom_call.1} parent=1 // pred_fallthru
      _
    // Predicated region
    $region22: #{tpu_custom_call.1} parent=1 // pred_check
      _
    $region23: #{tpu_custom_call.1} parent=1 // pred_check_branch
      %36 = sbr.rel (0) target = $region25
    $region24: #{tpu_custom_call.1} parent=1 // pred_region
      _
    $region25: #{tpu_custom_call.1} parent=1 // pred_fallthru
      _
    // Predicated region
    $region26: #{tpu_custom_call.1} parent=1 // pred_check
      _
    $region27: #{tpu_custom_call.1} parent=1 // pred_check_branch
      %38 = sbr.rel (0) target = $region29
    $region28: #{tpu_custom_call.1} parent=1 // pred_region
      _
    $region29: #{tpu_custom_call.1} parent=1 // pred_fallthru
      _
    // Predicated region
    $region30: #{tpu_custom_call.1} parent=1 // pred_check
      _
    $region31: #{tpu_custom_call.1} parent=1 // pred_check_branch
      %40 = sbr.rel (0) target = $region33
    $region32: #{tpu_custom_call.1} parent=1 // pred_region
      %42 = dma.done [#allocation4], 2048
    $region33: #{tpu_custom_call.1} parent=1 // pred_fallthru
      _
    %v43 = vld [vmem:[%s0] sm:$0xff]
    %v44 = vld [vmem:[%s1] sm:$0xf]
    %v45 = vld [vmem:[%s2] sm:$0x1]
    %v47 = vperm.slane %v45, 0
    %vm49 = vcmask 31744
    %v51 = vsel %vm49, %v43, 0
    %vm53 = vcmask 1043456
    %v55 = vsel %vm53, %v44, 0
    %57 = vmatpush.msra.mxu0 0.0
    %58 = vmatpush.msra.mxu0 0.0
    %59 = vmatpush.msra.mxu0 0.0
    %60 = vmatpush.msra.mxu0 0.0
    %61 = vmatpush.msra.mxu0 0.0
    %62 = vmatpush.msra.mxu0 0.0
    %63 = vmatpush.msra.mxu0 0.0
    %64 = vmatpush.msra.mxu0 0.0
    %65 = vmatpush.msra.mxu0 0.0
    %66 = vmatpush.msra.mxu0 0.0
    %67 = vmatpush.msra.mxu0 0.0
    %68 = vmatpush.msra.mxu0 0.0
    %69 = vmatpush.msra.mxu0 0.0
    %70 = vmatpush.msra.mxu0 0.0
    %71 = vmatpush.msra.mxu0 0.0
    %72 = vmatpush.msra.mxu0 %v55
    %73 = vmatmul.f32.gmra.mxu0 %v51
    %v74 = vpop.f32.mrf.mxu0
    %v75 = vadd.f32 %v47, %v74
    %76 = vdwg.mxu0
    %v77 = vmax.f32 %v75, 0.0
    %v78 = vld [vmem:[#allocation3] sm:$0xff]
    %v79 = vld [vmem:[#allocation3 + $0x8] sm:$0xff]
    %v80 = vld [vmem:[#allocation3 + $0x10] sm:$0xff]
    %v81 = vld [vmem:[#allocation3 + $0x18] sm:$0xff]
    %v82 = vld [vmem:[#allocation3 + $0x20] sm:$0xff]
    %v83 = vld [vmem:[#allocation3 + $0x28] sm:$0xff]
    %v84 = vld [vmem:[#allocation3 + $0x30] sm:$0xff]
    %v85 = vld [vmem:[#allocation3 + $0x38] sm:$0xff]
    %v86 = vld [vmem:[#allocation3 + $0x40] sm:$0xff]
    %v87 = vld [vmem:[#allocation3 + $0x48] sm:$0xff]
    %v88 = vld [vmem:[#allocation3 + $0x50] sm:$0xff]
    %v89 = vld [vmem:[#allocation3 + $0x58] sm:$0xff]
    %v90 = vld [vmem:[#allocation3 + $0x60] sm:$0xff]
    %v91 = vld [vmem:[#allocation3 + $0x68] sm:$0xff]
    %v92 = vld [vmem:[#allocation3 + $0x70] sm:$0xff]
    %v93 = vld [vmem:[#allocation3 + $0x78] sm:$0xff]
    %v94 = vld [vmem:[%s4] sm:$0x1]
    %v96 = vperm.slane %v94, 0
    %98 = vmatpush.msra.mxu0 %v93
    %99 = vmatpush.msra.mxu0 %v92
    %100 = vmatpush.msra.mxu0 %v91
    %101 = vmatpush.msra.mxu0 %v90
    %102 = vmatpush.msra.mxu0 %v89
    %103 = vmatpush.msra.mxu0 %v88
    %104 = vmatpush.msra.mxu0 %v87
    %105 = vmatpush.msra.mxu0 %v86
    %106 = vmatpush.msra.mxu0 %v85
    %107 = vmatpush.msra.mxu0 %v84
    %108 = vmatpush.msra.mxu0 %v83
    %109 = vmatpush.msra.mxu0 %v82
    %110 = vmatpush.msra.mxu0 %v81
    %111 = vmatpush.msra.mxu0 %v80
    %112 = vmatpush.msra.mxu0 %v79
    %113 = vmatpush.msra.mxu0 %v78
    %114 = vmatmul.f32.gmra.mxu0 %v77
    %v115 = vpop.f32.mrf.mxu0
    %v116 = vadd.f32 %v96, %v115
    %117 = vdwg.mxu0
    %v118 = vmax.f32 %v116, 0.0
    %v119 = vld [vmem:[%s5] sm:$0x1]
    %v121 = vperm.slane %v119, 0
    %v123 = vmul.f32 %v118, %v121
    %124 = vadd.xlane.f32.xlu0 %v123
    %v125 = vpop.xlane.xlu0 %124
    %s126 = sld [smem:[#allocation2]]
    %v127 = vstv %s126
    %v128 = vadd.f32 %v125, %v127
    %v129 = vxor.u32 %v128, 2147483648
    %v130 = vmul.f32 %v129, 1.442695
    %v131 = vpow.pop %v130
    %v132 = vadd.f32 %v131, 1.0
    %v133 = vrcp.pop %v132
    %v134 = vmul.f32 %v132, %v133
    %v135 = vsub.f32 1.0, %v134
    %v136 = vmul.f32 %v133, %v135
    %v137 = vadd.f32 %v133, %v136
    %vm138 = vweird.f32 %v132
    %vm139 = vweird.f32 %v133
    %vm140 = vmor %vm138, %vm139
    %v141 = vsel %vm140, %v133, %v137
    %v142 = vand.u32 2147483647, %v132
    %vm143 = vcmp.eq.f32.partialorder %v142, 8.507059e+37
    %v144 = vand.u32 %v132, 2147483648
    %v145 = vor.u32 1.1754944e-38, %v144
    %v146 = vsel %vm143, %v145, %v141
    %v147 = vmul.f32 1.0, %v146
    %v148 = vsub.f32 1.0, %v147
    %vm149 = vcmask 7168
    %150 = vst.msk [vmem:[%s7] sm:$0xff] %vm149, %v148
    %vm151 = vcmask 15368
    %152 = vst.msk [vmem:[%s7] sm:$0xff] %vm151, %v147
    // Predicated region
    $region34: #{tpu_custom_call.1} parent=1 // pred_check
      _
    $region35: #{tpu_custom_call.1} parent=1 // pred_check_branch
      %154 = sbr.rel (0) target = $region37
    $region36: #{tpu_custom_call.1} parent=1 // pred_region
      _
    $region37: #{tpu_custom_call.1} parent=1 // pred_fallthru
      _
    // Predicated region
    $region38: #{tpu_custom_call.1} parent=1 // pred_check
      _
    $region39: #{tpu_custom_call.1} parent=1 // pred_check_branch
      %156 = sbr.rel (0) target = $region41
    $region40: #{tpu_custom_call.1} parent=1 // pred_region
      _
    $region41: #{tpu_custom_call.1} parent=1 // pred_fallthru
      _
    %157 = vsyncpa [#allocation4], 1

</llo_original>
